<compile_context>
chip_gen: v6e
topology: v6e:2x2x1
jax: 0.10.0
libtpu: 0.0.40
codegen_flags: <defaults>
</compile_context>

<pallas_src>
import functools

import jax
import jax.numpy as jnp
from jax import lax
from jax.experimental import pallas as pl
from jax.experimental.pallas import tpu as pltpu

_LANE = 128
# Per-input-block budget (Pallas double-buffers it): 2 x 8 MiB + scratch stays
# well inside v7x's 64 MiB per-TC VMEM while sitting near the HBM roofline.
_BLOCK_BUDGET = 8 * 1024 * 1024
# Explicit scoped-VMEM limit: v5e's default (16 MiB) is smaller than the
# double-buffered input alone; 48 MiB is still safe on v7x.
_VMEM_LIMIT = 48 * 1024 * 1024


def _round_up(a, b):
    return (a + b - 1) // b * b


def _sublane_multiple(dtype):
    # Native VMEM tile: (8,128) for 4-byte, (16,128) for 2-byte, (32,128) for 1-byte dtypes.
    return max(8, 32 // jnp.dtype(dtype).itemsize)


def _int_power(x, n):
    """x**n for static int n >= 1 via binary exponentiation (pure VPU multiplies)."""
    result = None
    base = x
    while n > 0:
        if n & 1:
            result = base if result is None else result * base
        n >>= 1
        if n:
            base = base * base
    return result


def _pow_p(x, p, p_int):
    if p_int is not None:
        return _int_power(x, p_int)
    return jnp.power(x, jnp.float32(p))


def _gem_single_block_kernel(x_ref, o_ref, *, p, p_int, inv_p, eps, inv_hw):
    """grid=(nc_tiles,): whole H*W extent per block -> no scratch, no k loop."""
    xv = x_ref[...]
    x = jnp.maximum(xv, eps).astype(jnp.float32)   # clamp in input dtype (exact), then widen
    xp = _pow_p(x, p, p_int)
    pooled = jnp.sum(xp, axis=-1, keepdims=True) * jnp.float32(inv_hw)
    o_ref[...] = jnp.power(pooled, jnp.float32(inv_p)).astype(o_ref.dtype)


def _gem_multi_block_kernel(x_ref, o_ref, acc_ref, *, p, p_int, inv_p, eps,
                            inv_hw, hw, tile_hw, need_mask):
    """grid=(nc_tiles, hw_tiles): lane-dense (tile_nc, 128) f32 accumulator."""
    k = pl.program_id(1)

    @pl.when(k == 0)
    def _():
        acc_ref[...] = jnp.zeros_like(acc_ref)

    xv = x_ref[...]
    x = jnp.maximum(xv, eps).astype(jnp.float32)
    xp = _pow_p(x, p, p_int)
    if need_mask:
        # Non-divisible spatial tail: zero lanes past the true H*W so they do
        # not contribute to the sum (avoids any padded copy of the input).
        col = k * tile_hw + lax.broadcasted_iota(jnp.int32, xp.shape, 1)
        xp = jnp.where(col < hw, xp, jnp.float32(0.0))

    # Fold the lane groups down to 128 lanes with pure VALU adds.  The static
    # 128-wide slices stay on (8,128) tile boundaries -> no relayout and no
    # per-step cross-lane XLU reduce.
    folded = xp[:, 0:_LANE]
    for j in range(1, tile_hw // _LANE):
        folded = folded + xp[:, j * _LANE:(j + 1) * _LANE]
    acc_ref[...] += folded

    @pl.when(k == pl.num_programs(1) - 1)
    def _():
        pooled = jnp.sum(acc_ref[...], axis=-1, keepdims=True) * jnp.float32(inv_hw)
        o_ref[...] = jnp.power(pooled, jnp.float32(inv_p)).astype(o_ref.dtype)


def _pick_tile_nc(nc, sublane, max_rows):
    """Rows per block: dtype-aware sublane rounding, VMEM budget, and a cap so
    the parallel NC axis yields >= 2 blocks (both v7x TensorCores get work)
    whenever nc is large enough."""
    if nc >= 2 * sublane:
        tc_cap = _round_up(-(-nc // 2), sublane)
    else:
        tc_cap = nc
    cap = min(max_rows, tc_cap)
    if nc <= cap:
        return nc                       # whole NC extent: full-dim exemption
    return max(sublane, cap // sublane * sublane)


def generalized_mean_pooling(x, norm=3.0, eps=1e-6):
    """GeneralizedMeanPooling: (N, C, H, W) -> (N, C, 1, 1).

    # TODO(synk): only output_size=1 (global GeM pooling, the module default) is
    # implemented; general adaptive output sizes are not.
    """
    p = float(norm)
    assert p > 0
    n, c, h, w = x.shape
    nc, hw = n * c, h * w
    x2d = x.reshape(nc, hw)                 # contiguous view: no copy, no pad

    dtype = x2d.dtype
    itemsize = jnp.dtype(dtype).itemsize
    sublane = _sublane_multiple(dtype)
    hw_lanes = _round_up(hw, _LANE)         # real VMEM lane footprint per row

    # Integer-exponent fast path (GeM's common p=3).
    p_round = int(round(p))
    p_int = p_round if (abs(p - p_round) < 1e-12 and 1 <= p_round <= 16) else None

    common = dict(p=p, p_int=p_int, inv_p=1.0 / p, eps=float(eps),
                  inv_hw=1.0 / float(hw))

    if sublane * hw_lanes * itemsize <= _BLOCK_BUDGET:
        # ---- common case: whole spatial extent per block, 1-D NC grid -------
        max_rows = max(sublane,
                       (_BLOCK_BUDGET // (hw_lanes * itemsize)) // sublane * sublane)
        tile_nc = _pick_tile_nc(nc, sublane, max_rows)
        out2d = pl.pallas_call(
            functools.partial(_gem_single_block_kernel, **common),
            out_shape=jax.ShapeDtypeStruct((nc, 1), dtype),
            grid=(pl.cdiv(nc, tile_nc),),
            in_specs=[pl.BlockSpec((tile_nc, hw), lambda i: (i, 0))],
            out_specs=pl.BlockSpec((tile_nc, 1), lambda i: (i, 0)),
            compiler_params=pltpu.CompilerParams(
                dimension_semantics=("parallel",),
                vmem_limit_bytes=_VMEM_LIMIT),
        )(x2d)
    else:
        # ---- huge-H*W fallback: spatial (reduction) axis tiled last ---------
        tile_hw = 64 * _LANE                # 8192 lanes; hw >> tile_hw in this branch
        max_rows = max(sublane,
                       (_BLOCK_BUDGET // (tile_hw * itemsize)) // sublane * sublane)
        tile_nc = _pick_tile_nc(nc, sublane, max_rows)
        out2d = pl.pallas_call(
            functools.partial(_gem_multi_block_kernel, hw=hw, tile_hw=tile_hw,
                              need_mask=(hw % tile_hw != 0), **common),
            out_shape=jax.ShapeDtypeStruct((nc, 1), dtype),
            grid=(pl.cdiv(nc, tile_nc), pl.cdiv(hw, tile_hw)),
            in_specs=[pl.BlockSpec((tile_nc, tile_hw), lambda i, k: (i, k))],
            out_specs=pl.BlockSpec((tile_nc, 1), lambda i, k: (i, 0)),
            scratch_shapes=[pltpu.VMEM((tile_nc, _LANE), jnp.float32)],
            compiler_params=pltpu.CompilerParams(
                dimension_semantics=("parallel", "arbitrary"),
                vmem_limit_bytes=_VMEM_LIMIT),
        )(x2d)

    return out2d.reshape(n, c, 1, 1)


def _reference(x, norm=3.0, eps=1e-6):
    out = jnp.maximum(x, eps) ** norm
    pooled = jnp.mean(out, axis=(2, 3), keepdims=True)
    return pooled ** (1.0 / norm)


if __name__ == "__main__":
    key = jax.random.PRNGKey(0)
    # Small shapes consistent with an NCHW feature map
    N, C, H, W = 2, 4, 16, 16
    x = jax.random.normal(key, (N, C, H, W), dtype=jnp.float32)

    norm = 3.0
    eps = 1e-6

    out = generalized_mean_pooling(x, norm=norm, eps=eps)
    out = jax.block_until_ready(out)

    ref = _reference(x, norm=norm, eps=eps)
    assert out.shape == (N, C, 1, 1), out.shape
    assert jnp.allclose(out, ref, atol=1e-5, rtol=1e-5), (
        float(jnp.max(jnp.abs(out - ref)))
    )
    print("KERNEL_OK")
</pallas_src>

<mosaic_0001>
module attributes {stable_mosaic.version = 11 : i64} {
  func.func @_gem_single_block_kernel(%arg0: i32, %arg1: memref<8x256xf32, #tpu.memory_space<vmem>>, %arg2: memref<8x1xf32, #tpu.memory_space<vmem>>) attributes {dimension_semantics = [#tpu.dimension_semantics<parallel>], iteration_bounds = array<i64: 1>, scalar_prefetch = 0 : i64, scratch_operands = 0 : i64, tpu.core_type = #tpu.core_type<tc>, window_params = [{transform_indices = @transform_0, window_bounds = array<i64: 8, 256>}, {transform_indices = @transform_1, window_bounds = array<i64: 8, 1>}]} {
    %c0 = arith.constant 0 : index
    %c0_0 = arith.constant 0 : index
    %0 = vector.load %arg1[%c0, %c0_0] : memref<8x256xf32, #tpu.memory_space<vmem>>, vector<8x256xf32>
    %cst = arith.constant 9.99999997E-7 : f32
    %1 = vector.broadcast %cst : f32 to vector<8x256xf32>
    %2 = arith.maximumf %0, %1 : vector<8x256xf32>
    %3 = arith.mulf %2, %2 : vector<8x256xf32>
    %4 = arith.mulf %2, %3 : vector<8x256xf32>
    %cst_1 = arith.constant dense<0.000000e+00> : vector<8xf32>
    %5 = vector.multi_reduction <add>, %4, %cst_1 [1] : vector<8x256xf32> to vector<8xf32>
    %6 = vector.shape_cast %5 : vector<8xf32> to vector<8x1xf32>
    %cst_2 = arith.constant 3.906250e-03 : f32
    %7 = vector.broadcast %cst_2 : f32 to vector<8x1xf32>
    %8 = arith.mulf %6, %7 : vector<8x1xf32>
    %cst_3 = arith.constant 0.333333343 : f32
    %9 = vector.broadcast %cst_3 : f32 to vector<8x1xf32>
    %10 = math.powf %8, %9 : vector<8x1xf32>
    %c0_4 = arith.constant 0 : index
    %c0_5 = arith.constant 0 : index
    %11 = vector.load %arg2[%c0_4, %c0_5] : memref<8x1xf32, #tpu.memory_space<vmem>>, vector<8x1xf32>
    tpu.vector_store %arg2[%c0_4, %c0_5], %10 {strides = array<i32>} : memref<8x1xf32, #tpu.memory_space<vmem>>, vector<8x1xf32>,
    return
  }
  func.func @transform_0(%arg0: i32) -> (i32, i32) {
    %c0_i32 = arith.constant 0 : i32
    %c0_i32_0 = arith.constant 0 : i32
    return %arg0, %c0_i32 : i32, i32
  }
  func.func @transform_1(%arg0: i32) -> (i32, i32) {
    %c0_i32 = arith.constant 0 : i32
    %c0_i32_0 = arith.constant 0 : i32
    return %arg0, %c0_i32 : i32, i32
  }
}

</mosaic_0001>

<llo_original>
// kernel: tpu_custom_call.1
$region0: #{tpu_custom_call.1}
  #allocation0 [shape = 'u32[]', space=smem, size = 0x4, offset = 0x4, fixed_abs, tag = 'smem constant byte address 0x4 - core index']
  #allocation1 [shape = 'u32[144,128]{1,0:T(1,128)}', space=vmem, size = 0x12000, scoped, tag = 'internal scratch']
  %s0 = inlined_call_operand.hbm [shape: f32[8,256], index: 0, kind: input, shape index: {}]
  %s1 = inlined_call_operand.vmem [shape: f32[8,1], index: 1, kind: output, shape index: {}]
  %s2 = sld [smem:[#allocation0]]
  $region18: #{tpu_custom_call.1} parent=0
    _
  %s4 = ssub.s32 1, %s2
  %s5 = scalar_select 0, %s4, %s2
  $region1: #{tpu_custom_call.1} parent=0
    #allocation2 [shape = 'u8[8192]{0}', space=vmem, size = 0x2000, scoped, tag = 'input window, operand 0, single buffered']
    #allocation3 [shape = 's32[1]{0}', space=sflag, size = 0x4, scoped, tag = 'scoped memory for tpu_custom_call.1']
    %6 = vsyncpa [#allocation3], 0
    // Predicated region
    $region2: #{tpu_custom_call.1} parent=1 // pred_check
      _
    $region3: #{tpu_custom_call.1} parent=1 // pred_check_branch
      %8 = sbr.rel (0) target = $region5
    $region4: #{tpu_custom_call.1} parent=1 // pred_region
      %s10 = ssub.s32 256, 256
      %11 = vsyncadd [#allocation3], %s10
      %s13 = sshll.u32 [#allocation2], 4
      %s14 = int_to_ptr.vmem [resolvable:$true] %s13
      %16 = dma.hbm_to_vmem [thread:$0]  %s0, 256, %s14, [#allocation3]
    $region5: #{tpu_custom_call.1} parent=1 // pred_fallthru
      _
    // Predicated region
    $region6: #{tpu_custom_call.1} parent=1 // pred_check
      _
    $region7: #{tpu_custom_call.1} parent=1 // pred_check_branch
      %18 = sbr.rel (0) target = $region9
    $region8: #{tpu_custom_call.1} parent=1 // pred_region
      %19 = dma.done [#allocation3], 256
    $region9: #{tpu_custom_call.1} parent=1 // pred_fallthru
      _
    %v20 = vld [vmem:[#allocation2] sm:$0xff]
    %v21 = vld [vmem:[#allocation2 + $0x8] sm:$0xff]
    %v22 = vmax.f32 %v20, 1e-06
    %v23 = vmax.f32 %v21, 1e-06
    %v24 = vmul.f32 %v22, %v22
    %v25 = vmul.f32 %v23, %v23
    %v26 = vmul.f32 %v22, %v24
    %v27 = vmul.f32 %v23, %v25
    %v28 = vadd.f32 %v26, %v27
    %29 = vadd.xlane.f32.xlu0 %v28
    %v30 = vpop.xlane.xlu0 %29
    %v31 = vmul.f32 %v30, 0.00390625
    %v32 = vpow.f32 %v31, 0.33333334
    %vm33 = vcmask 7168
    %34 = vst.msk [vmem:[%s1] sm:$0xff] %vm33, %v32
    // Predicated region
    $region10: #{tpu_custom_call.1} parent=1 // pred_check
      _
    $region11: #{tpu_custom_call.1} parent=1 // pred_check_branch
      %36 = sbr.rel (0) target = $region13
    $region12: #{tpu_custom_call.1} parent=1 // pred_region
      _
    $region13: #{tpu_custom_call.1} parent=1 // pred_fallthru
      _
    // Predicated region
    $region14: #{tpu_custom_call.1} parent=1 // pred_check
      _
    $region15: #{tpu_custom_call.1} parent=1 // pred_check_branch
      %38 = sbr.rel (0) target = $region17
    $region16: #{tpu_custom_call.1} parent=1 // pred_region
      _
    $region17: #{tpu_custom_call.1} parent=1 // pred_fallthru
      _
    %39 = vsyncpa [#allocation3], 1

</llo_original>
